<compile_context>
chip_gen: v5e
topology: v5e:2x2
jax: 0.10.0
libtpu: 0.0.40
codegen_flags: <defaults>
</compile_context>

<pallas_src>
import math
import functools

import jax
import jax.numpy as jnp
from jax import lax
from jax.experimental import pallas as pl
from jax.experimental.pallas import tpu as pltpu


def encoder_layer2_kernel(x_ref, mask_ref,
                          wqkv_ref, bqkv_ref,
                          wo_ref, bo_ref,
                          gamma_ref, beta_ref,
                          y_ref, attn_ref,
                          out_scratch,
                          *, n_heads, head_dim, eps):
    bB, L, D = x_ref.shape
    M = bB * L

    x = x_ref[...]                        # (bB, L, D)
    x2 = x.reshape(M, D)                  # flatten batch rows -> bigger MXU M

    # Fused QKV projection: one (M, D) x (D, 3D) MXU matmul.
    qkv = jnp.dot(x2, wqkv_ref[...],
                  preferred_element_type=jnp.float32) + bqkv_ref[...]
    q = qkv[:, 0 * D:1 * D]
    k = qkv[:, 1 * D:2 * D]
    v = qkv[:, 2 * D:3 * D]

    mask = mask_ref[...]                  # (L, L) additive mask
    scale = 1.0 / math.sqrt(head_dim)

    # Static loop over heads; each head runs matmuls batched over the bB batch
    # elements, with the K transpose absorbed into the contraction.
    for h in range(n_heads):
        lo = h * head_dim
        hi = lo + head_dim
        qh = q[:, lo:hi].reshape(bB, L, head_dim)
        kh = k[:, lo:hi].reshape(bB, L, head_dim)
        vh = v[:, lo:hi].reshape(bB, L, head_dim)

        # scores = einsum('blhe,bshe->bhls') for this head, scaled + masked.
        s = jnp.einsum('ble,bse->bls', qh, kh,
                       preferred_element_type=jnp.float32) * scale + mask

        # Numerically stable softmax; reciprocal on the (otherwise idle) EUP.
        s = s - jnp.max(s, axis=-1, keepdims=True)
        e = jnp.exp(s)
        a = e * pl.reciprocal(jnp.sum(e, axis=-1, keepdims=True), approx=True)

        # Dropout on A is identity in eval mode.
        attn_ref[:, h, :, :] = a          # one contiguous (bB, L, L) store

        oh = jnp.einsum('bls,bse->ble', a, vh,
                        preferred_element_type=jnp.float32)
        # Write this head's context directly into the merged (M, D) slab.
        out_scratch[:, lo:hi] = oh.reshape(M, head_dim)

    # Output projection.
    o = jnp.dot(out_scratch[...], wo_ref[...],
                preferred_element_type=jnp.float32) + bo_ref[...]

    # Residual + LayerNorm over the hidden dim (biased variance, like torch).
    z = x2 + o
    mean = jnp.mean(z, axis=-1, keepdims=True)
    var = jnp.mean((z - mean) ** 2, axis=-1, keepdims=True)
    zn = (z - mean) * lax.rsqrt(var + eps)
    y = zn * gamma_ref[...] + beta_ref[...]
    y_ref[...] = y.reshape(bB, L, D).astype(y_ref.dtype)


def encoder_layer2(x, attn_mask, params, *, n_heads, batch_block=None):
    B, L, D = x.shape
    assert D % n_heads == 0
    E = D // n_heads

    # Process several batch elements per grid step to fill the MXU rows.
    bB = B if batch_block is None else batch_block
    assert B % bB == 0

    # Host-side packing of Wq/Wk/Wv into one (D, 3D) weight (+ (1, 3D) bias).
    wqkv = jnp.concatenate([params["wq"], params["wk"], params["wv"]], axis=1)
    bqkv = jnp.concatenate([params["bq"], params["bk"], params["bv"]], axis=1)

    kernel = functools.partial(
        encoder_layer2_kernel, n_heads=n_heads, head_dim=E, eps=1e-5)

    const2d = lambda shape: pl.BlockSpec(shape, lambda i: (0, 0))

    y, attn = pl.pallas_call(
        kernel,
        out_shape=(
            jax.ShapeDtypeStruct((B, L, D), jnp.float32),
            jax.ShapeDtypeStruct((B, n_heads, L, L), jnp.float32),
        ),
        grid_spec=pltpu.PrefetchScalarGridSpec(
            num_scalar_prefetch=0,
            grid=(B // bB,),
            in_specs=[
                pl.BlockSpec((bB, L, D), lambda i: (i, 0, 0)),   # x
                const2d((L, L)),                                 # attn_mask
                const2d((D, 3 * D)), const2d((1, 3 * D)),        # Wqkv, bqkv
                const2d((D, D)), const2d((1, D)),                # Wo, bo
                const2d((1, D)), const2d((1, D)),                # gamma, beta
            ],
            out_specs=[
                pl.BlockSpec((bB, L, D), lambda i: (i, 0, 0)),              # y
                pl.BlockSpec((bB, n_heads, L, L), lambda i: (i, 0, 0, 0)),  # A
            ],
            scratch_shapes=[pltpu.VMEM((bB * L, D), jnp.float32)],
        ),
        compiler_params=pltpu.CompilerParams(
            dimension_semantics=("parallel",),
            vmem_limit_bytes=32 * 1024 * 1024),
    )(
        x, attn_mask,
        wqkv, bqkv,
        params["wo"], params["bo"],
        params["gamma"], params["beta"],
    )
    return y, attn


def init_params(key, hidden_dim):
    ks = jax.random.split(key, 8)
    std = 1.0 / math.sqrt(hidden_dim)
    def lin(kw, kb):
        w = jax.random.uniform(kw, (hidden_dim, hidden_dim), jnp.float32, -std, std)
        b = jax.random.uniform(kb, (1, hidden_dim), jnp.float32, -std, std)
        return w, b
    wq, bq = lin(ks[0], ks[1])
    wk, bk = lin(ks[2], ks[3])
    wv, bv = lin(ks[4], ks[5])
    wo, bo = lin(ks[6], ks[7])
    return dict(
        wq=wq, bq=bq, wk=wk, bk=bk, wv=wv, bv=bv, wo=wo, bo=bo,
        gamma=jnp.ones((1, hidden_dim), jnp.float32),
        beta=jnp.zeros((1, hidden_dim), jnp.float32),
    )


if __name__ == "__main__":
    B, L, hidden_dim, n_heads = 2, 8, 32, 4

    key = jax.random.PRNGKey(0)
    kx, kp = jax.random.split(key)
    x = jax.random.normal(kx, (B, L, hidden_dim), jnp.float32)
    # The PyTorch forward adds attn_mask to the scores; a zero additive mask
    # is the no-op equivalent.
    attn_mask = jnp.zeros((L, L), jnp.float32)
    params = init_params(kp, hidden_dim)

    y, attn = encoder_layer2(x, attn_mask, params, n_heads=n_heads)
    jax.block_until_ready((y, attn))

    assert y.shape == (B, L, hidden_dim)
    assert attn.shape == (B, n_heads, L, L)
    print("KERNEL_OK")
</pallas_src>

<mosaic_0001>
module attributes {stable_mosaic.version = 11 : i64} {
  func.func @encoder_layer2_kernel(%arg0: i32, %arg1: memref<2x8x32xf32, #tpu.memory_space<vmem>>, %arg2: memref<8x8xf32, #tpu.memory_space<vmem>>, %arg3: memref<32x96xf32, #tpu.memory_space<vmem>>, %arg4: memref<1x96xf32, #tpu.memory_space<vmem>>, %arg5: memref<32x32xf32, #tpu.memory_space<vmem>>, %arg6: memref<1x32xf32, #tpu.memory_space<vmem>>, %arg7: memref<1x32xf32, #tpu.memory_space<vmem>>, %arg8: memref<1x32xf32, #tpu.memory_space<vmem>>, %arg9: memref<2x8x32xf32, #tpu.memory_space<vmem>>, %arg10: memref<2x4x8x8xf32, #tpu.memory_space<vmem>>, %arg11: memref<16x32xf32, #tpu.memory_space<vmem>>) attributes {dimension_semantics = [#tpu.dimension_semantics<parallel>], iteration_bounds = array<i64: 1>, scalar_prefetch = 0 : i64, scratch_operands = 1 : i64, tpu.core_type = #tpu.core_type<tc>, window_params = [{transform_indices = @transform_0, window_bounds = array<i64: 2, 8, 32>}, {pipeline_mode = #tpu.pipeline_mode<synchronous>, transform_indices = @transform_1, window_bounds = array<i64: 8, 8>}, {pipeline_mode = #tpu.pipeline_mode<synchronous>, transform_indices = @transform_2, window_bounds = array<i64: 32, 96>}, {pipeline_mode = #tpu.pipeline_mode<synchronous>, transform_indices = @transform_3, window_bounds = array<i64: 1, 96>}, {pipeline_mode = #tpu.pipeline_mode<synchronous>, transform_indices = @transform_4, window_bounds = array<i64: 32, 32>}, {pipeline_mode = #tpu.pipeline_mode<synchronous>, transform_indices = @transform_5, window_bounds = array<i64: 1, 32>}, {pipeline_mode = #tpu.pipeline_mode<synchronous>, transform_indices = @transform_6, window_bounds = array<i64: 1, 32>}, {pipeline_mode = #tpu.pipeline_mode<synchronous>, transform_indices = @transform_7, window_bounds = array<i64: 1, 32>}, {transform_indices = @transform_8, window_bounds = array<i64: 2, 8, 32>}, {transform_indices = @transform_9, window_bounds = array<i64: 2, 4, 8, 8>}]} {
    %c0 = arith.constant 0 : index
    %c0_0 = arith.constant 0 : index
    %c0_1 = arith.constant 0 : index
    %0 = vector.load %arg1[%c0, %c0_0, %c0_1] : memref<2x8x32xf32, #tpu.memory_space<vmem>>, vector<2x8x32xf32>
    %1 = vector.shape_cast %0 : vector<2x8x32xf32> to vector<16x32xf32>
    %c0_2 = arith.constant 0 : index
    %c0_3 = arith.constant 0 : index
    %2 = vector.load %arg3[%c0_2, %c0_3] : memref<32x96xf32, #tpu.memory_space<vmem>>, vector<32x96xf32>
    %cst = arith.constant dense<0.000000e+00> : vector<16x96xf32>
    %3 = tpu.matmul %1, %2, %cst {dimension_numbers = #tpu.dot_dimension_numbers<[1], [0], [0], [1], [0, 0, 1, 1], [], []>} : vector<16x32xf32>, vector<32x96xf32>, vector<16x96xf32> -> vector<16x96xf32>
    %c0_4 = arith.constant 0 : index
    %c0_5 = arith.constant 0 : index
    %4 = vector.load %arg4[%c0_4, %c0_5] : memref<1x96xf32, #tpu.memory_space<vmem>>, vector<1x96xf32>
    %5 = vector.broadcast %4 : vector<1x96xf32> to vector<16x96xf32>
    %6 = arith.addf %3, %5 : vector<16x96xf32>
    %7 = vector.extract_strided_slice %6 {offsets = [0, 0], sizes = [16, 32], strides = [1, 1]} : vector<16x96xf32> to vector<16x32xf32>
    %8 = vector.extract_strided_slice %6 {offsets = [0, 32], sizes = [16, 32], strides = [1, 1]} : vector<16x96xf32> to vector<16x32xf32>
    %9 = vector.extract_strided_slice %6 {offsets = [0, 64], sizes = [16, 32], strides = [1, 1]} : vector<16x96xf32> to vector<16x32xf32>
    %c0_6 = arith.constant 0 : index
    %c0_7 = arith.constant 0 : index
    %10 = vector.load %arg2[%c0_6, %c0_7] : memref<8x8xf32, #tpu.memory_space<vmem>>, vector<8x8xf32>
    %11 = vector.extract_strided_slice %7 {offsets = [0, 0], sizes = [16, 8], strides = [1, 1]} : vector<16x32xf32> to vector<16x8xf32>
    %12 = vector.shape_cast %11 : vector<16x8xf32> to vector<2x8x8xf32>
    %13 = vector.extract_strided_slice %8 {offsets = [0, 0], sizes = [16, 8], strides = [1, 1]} : vector<16x32xf32> to vector<16x8xf32>
    %14 = vector.shape_cast %13 : vector<16x8xf32> to vector<2x8x8xf32>
    %15 = vector.extract_strided_slice %9 {offsets = [0, 0], sizes = [16, 8], strides = [1, 1]} : vector<16x32xf32> to vector<16x8xf32>
    %16 = vector.shape_cast %15 : vector<16x8xf32> to vector<2x8x8xf32>
    "tpu.trace_start"() <{level = 10 : i32, message = "ble,bse->bls"}> : () -> ()
    %cst_8 = arith.constant dense<0.000000e+00> : vector<2x8x8xf32>
    %17 = tpu.matmul %12, %14, %cst_8 {dimension_numbers = #tpu.dot_dimension_numbers<[2], [2], [1], [1], [0, 0, 0, 1, 1, 1], [0], [0]>} : vector<2x8x8xf32>, vector<2x8x8xf32>, vector<2x8x8xf32> -> vector<2x8x8xf32>
    "tpu.trace_stop"() : () -> ()
    %cst_9 = arith.constant 0.353553385 : f32
    %18 = vector.broadcast %cst_9 : f32 to vector<2x8x8xf32>
    %19 = arith.mulf %17, %18 : vector<2x8x8xf32>
    %20 = vector.shape_cast %10 : vector<8x8xf32> to vector<1x8x8xf32>
    %21 = vector.broadcast %20 : vector<1x8x8xf32> to vector<2x8x8xf32>
    %22 = arith.addf %19, %21 : vector<2x8x8xf32>
    %cst_10 = arith.constant dense<0xFF800000> : vector<2x8xf32>
    %23 = vector.multi_reduction <maximumf>, %22, %cst_10 [2] : vector<2x8x8xf32> to vector<2x8xf32>
    %24 = vector.shape_cast %23 : vector<2x8xf32> to vector<2x8x1xf32>
    %25 = vector.broadcast %24 : vector<2x8x1xf32> to vector<2x8x8xf32>
    %26 = arith.subf %22, %25 : vector<2x8x8xf32>
    %27 = math.exp %26 : vector<2x8x8xf32>
    %cst_11 = arith.constant dense<0.000000e+00> : vector<2x8xf32>
    %28 = vector.multi_reduction <add>, %27, %cst_11 [2] : vector<2x8x8xf32> to vector<2x8xf32>
    %29 = vector.shape_cast %28 : vector<2x8xf32> to vector<2x8x1xf32>
    %30 = tpu.reciprocal %29 {approx = true} : vector<2x8x1xf32> -> vector<2x8x1xf32>
    %31 = vector.broadcast %30 : vector<2x8x1xf32> to vector<2x8x8xf32>
    %32 = arith.mulf %27, %31 : vector<2x8x8xf32>
    %c0_12 = arith.constant 0 : index
    %c0_13 = arith.constant 0 : index
    %c0_14 = arith.constant 0 : index
    %c0_15 = arith.constant 0 : index
    %33 = vector.load %arg10[%c0_12, %c0_13, %c0_14, %c0_15] : memref<2x4x8x8xf32, #tpu.memory_space<vmem>>, vector<2x1x8x8xf32>
    %34 = vector.shape_cast %33 : vector<2x1x8x8xf32> to vector<2x8x8xf32>
    %35 = vector.shape_cast %32 : vector<2x8x8xf32> to vector<2x1x8x8xf32>
    tpu.vector_store %arg10[%c0_12, %c0_13, %c0_14, %c0_15], %35 {strides = array<i32>} : memref<2x4x8x8xf32, #tpu.memory_space<vmem>>, vector<2x1x8x8xf32>,
    "tpu.trace_start"() <{level = 10 : i32, message = "bls,bse->ble"}> : () -> ()
    %cst_16 = arith.constant dense<0.000000e+00> : vector<2x8x8xf32>
    %36 = tpu.matmul %32, %16, %cst_16 {dimension_numbers = #tpu.dot_dimension_numbers<[2], [1], [1], [2], [0, 0, 0, 1, 1, 2], [0], [0]>} : vector<2x8x8xf32>, vector<2x8x8xf32>, vector<2x8x8xf32> -> vector<2x8x8xf32>
    "tpu.trace_stop"() : () -> ()
    %37 = vector.shape_cast %36 : vector<2x8x8xf32> to vector<16x8xf32>
    %c0_17 = arith.constant 0 : index
    %c0_18 = arith.constant 0 : index
    %38 = vector.load %arg11[%c0_17, %c0_18] : memref<16x32xf32, #tpu.memory_space<vmem>>, vector<16x8xf32>
    tpu.vector_store %arg11[%c0_17, %c0_18], %37 {strides = array<i32>} : memref<16x32xf32, #tpu.memory_space<vmem>>, vector<16x8xf32>,
    %39 = vector.extract_strided_slice %7 {offsets = [0, 8], sizes = [16, 8], strides = [1, 1]} : vector<16x32xf32> to vector<16x8xf32>
    %40 = vector.shape_cast %39 : vector<16x8xf32> to vector<2x8x8xf32>
    %41 = vector.extract_strided_slice %8 {offsets = [0, 8], sizes = [16, 8], strides = [1, 1]} : vector<16x32xf32> to vector<16x8xf32>
    %42 = vector.shape_cast %41 : vector<16x8xf32> to vector<2x8x8xf32>
    %43 = vector.extract_strided_slice %9 {offsets = [0, 8], sizes = [16, 8], strides = [1, 1]} : vector<16x32xf32> to vector<16x8xf32>
    %44 = vector.shape_cast %43 : vector<16x8xf32> to vector<2x8x8xf32>
    "tpu.trace_start"() <{level = 10 : i32, message = "ble,bse->bls"}> : () -> ()
    %cst_19 = arith.constant dense<0.000000e+00> : vector<2x8x8xf32>
    %45 = tpu.matmul %40, %42, %cst_19 {dimension_numbers = #tpu.dot_dimension_numbers<[2], [2], [1], [1], [0, 0, 0, 1, 1, 1], [0], [0]>} : vector<2x8x8xf32>, vector<2x8x8xf32>, vector<2x8x8xf32> -> vector<2x8x8xf32>
    "tpu.trace_stop"() : () -> ()
    %cst_20 = arith.constant 0.353553385 : f32
    %46 = vector.broadcast %cst_20 : f32 to vector<2x8x8xf32>
    %47 = arith.mulf %45, %46 : vector<2x8x8xf32>
    %48 = vector.shape_cast %10 : vector<8x8xf32> to vector<1x8x8xf32>
    %49 = vector.broadcast %48 : vector<1x8x8xf32> to vector<2x8x8xf32>
    %50 = arith.addf %47, %49 : vector<2x8x8xf32>
    %cst_21 = arith.constant dense<0xFF800000> : vector<2x8xf32>
    %51 = vector.multi_reduction <maximumf>, %50, %cst_21 [2] : vector<2x8x8xf32> to vector<2x8xf32>
    %52 = vector.shape_cast %51 : vector<2x8xf32> to vector<2x8x1xf32>
    %53 = vector.broadcast %52 : vector<2x8x1xf32> to vector<2x8x8xf32>
    %54 = arith.subf %50, %53 : vector<2x8x8xf32>
    %55 = math.exp %54 : vector<2x8x8xf32>
    %cst_22 = arith.constant dense<0.000000e+00> : vector<2x8xf32>
    %56 = vector.multi_reduction <add>, %55, %cst_22 [2] : vector<2x8x8xf32> to vector<2x8xf32>
    %57 = vector.shape_cast %56 : vector<2x8xf32> to vector<2x8x1xf32>
    %58 = tpu.reciprocal %57 {approx = true} : vector<2x8x1xf32> -> vector<2x8x1xf32>
    %59 = vector.broadcast %58 : vector<2x8x1xf32> to vector<2x8x8xf32>
    %60 = arith.mulf %55, %59 : vector<2x8x8xf32>
    %c0_23 = arith.constant 0 : index
    %c1 = arith.constant 1 : index
    %c0_24 = arith.constant 0 : index
    %c0_25 = arith.constant 0 : index
    %61 = vector.load %arg10[%c0_23, %c1, %c0_24, %c0_25] : memref<2x4x8x8xf32, #tpu.memory_space<vmem>>, vector<2x1x8x8xf32>
    %62 = vector.shape_cast %61 : vector<2x1x8x8xf32> to vector<2x8x8xf32>
    %63 = vector.shape_cast %60 : vector<2x8x8xf32> to vector<2x1x8x8xf32>
    tpu.vector_store %arg10[%c0_23, %c1, %c0_24, %c0_25], %63 {strides = array<i32>} : memref<2x4x8x8xf32, #tpu.memory_space<vmem>>, vector<2x1x8x8xf32>,
    "tpu.trace_start"() <{level = 10 : i32, message = "bls,bse->ble"}> : () -> ()
    %cst_26 = arith.constant dense<0.000000e+00> : vector<2x8x8xf32>
    %64 = tpu.matmul %60, %44, %cst_26 {dimension_numbers = #tpu.dot_dimension_numbers<[2], [1], [1], [2], [0, 0, 0, 1, 1, 2], [0], [0]>} : vector<2x8x8xf32>, vector<2x8x8xf32>, vector<2x8x8xf32> -> vector<2x8x8xf32>
    "tpu.trace_stop"() : () -> ()
    %65 = vector.shape_cast %64 : vector<2x8x8xf32> to vector<16x8xf32>
    %c0_27 = arith.constant 0 : index
    %c8 = arith.constant 8 : index
    %66 = vector.load %arg11[%c0_27, %c8] : memref<16x32xf32, #tpu.memory_space<vmem>>, vector<16x8xf32>
    tpu.vector_store %arg11[%c0_27, %c8], %65 {strides = array<i32>} : memref<16x32xf32, #tpu.memory_space<vmem>>, vector<16x8xf32>,
    %67 = vector.extract_strided_slice %7 {offsets = [0, 16], sizes = [16, 8], strides = [1, 1]} : vector<16x32xf32> to vector<16x8xf32>
    %68 = vector.shape_cast %67 : vector<16x8xf32> to vector<2x8x8xf32>
    %69 = vector.extract_strided_slice %8 {offsets = [0, 16], sizes = [16, 8], strides = [1, 1]} : vector<16x32xf32> to vector<16x8xf32>
    %70 = vector.shape_cast %69 : vector<16x8xf32> to vector<2x8x8xf32>
    %71 = vector.extract_strided_slice %9 {offsets = [0, 16], sizes = [16, 8], strides = [1, 1]} : vector<16x32xf32> to vector<16x8xf32>
    %72 = vector.shape_cast %71 : vector<16x8xf32> to vector<2x8x8xf32>
    "tpu.trace_start"() <{level = 10 : i32, message = "ble,bse->bls"}> : () -> ()
    %cst_28 = arith.constant dense<0.000000e+00> : vector<2x8x8xf32>
    %73 = tpu.matmul %68, %70, %cst_28 {dimension_numbers = #tpu.dot_dimension_numbers<[2], [2], [1], [1], [0, 0, 0, 1, 1, 1], [0], [0]>} : vector<2x8x8xf32>, vector<2x8x8xf32>, vector<2x8x8xf32> -> vector<2x8x8xf32>
    "tpu.trace_stop"() : () -> ()
    %cst_29 = arith.constant 0.353553385 : f32
    %74 = vector.broadcast %cst_29 : f32 to vector<2x8x8xf32>
    %75 = arith.mulf %73, %74 : vector<2x8x8xf32>
    %76 = vector.shape_cast %10 : vector<8x8xf32> to vector<1x8x8xf32>
    %77 = vector.broadcast %76 : vector<1x8x8xf32> to vector<2x8x8xf32>
    %78 = arith.addf %75, %77 : vector<2x8x8xf32>
    %cst_30 = arith.constant dense<0xFF800000> : vector<2x8xf32>
    %79 = vector.multi_reduction <maximumf>, %78, %cst_30 [2] : vector<2x8x8xf32> to vector<2x8xf32>
    %80 = vector.shape_cast %79 : vector<2x8xf32> to vector<2x8x1xf32>
    %81 = vector.broadcast %80 : vector<2x8x1xf32> to vector<2x8x8xf32>
    %82 = arith.subf %78, %81 : vector<2x8x8xf32>
    %83 = math.exp %82 : vector<2x8x8xf32>
    %cst_31 = arith.constant dense<0.000000e+00> : vector<2x8xf32>
    %84 = vector.multi_reduction <add>, %83, %cst_31 [2] : vector<2x8x8xf32> to vector<2x8xf32>
    %85 = vector.shape_cast %84 : vector<2x8xf32> to vector<2x8x1xf32>
    %86 = tpu.reciprocal %85 {approx = true} : vector<2x8x1xf32> -> vector<2x8x1xf32>
    %87 = vector.broadcast %86 : vector<2x8x1xf32> to vector<2x8x8xf32>
    %88 = arith.mulf %83, %87 : vector<2x8x8xf32>
    %c0_32 = arith.constant 0 : index
    %c2 = arith.constant 2 : index
    %c0_33 = arith.constant 0 : index
    %c0_34 = arith.constant 0 : index
    %89 = vector.load %arg10[%c0_32, %c2, %c0_33, %c0_34] : memref<2x4x8x8xf32, #tpu.memory_space<vmem>>, vector<2x1x8x8xf32>
    %90 = vector.shape_cast %89 : vector<2x1x8x8xf32> to vector<2x8x8xf32>
    %91 = vector.shape_cast %88 : vector<2x8x8xf32> to vector<2x1x8x8xf32>
    tpu.vector_store %arg10[%c0_32, %c2, %c0_33, %c0_34], %91 {strides = array<i32>} : memref<2x4x8x8xf32, #tpu.memory_space<vmem>>, vector<2x1x8x8xf32>,
    "tpu.trace_start"() <{level = 10 : i32, message = "bls,bse->ble"}> : () -> ()
    %cst_35 = arith.constant dense<0.000000e+00> : vector<2x8x8xf32>
    %92 = tpu.matmul %88, %72, %cst_35 {dimension_numbers = #tpu.dot_dimension_numbers<[2], [1], [1], [2], [0, 0, 0, 1, 1, 2], [0], [0]>} : vector<2x8x8xf32>, vector<2x8x8xf32>, vector<2x8x8xf32> -> vector<2x8x8xf32>
    "tpu.trace_stop"() : () -> ()
    %93 = vector.shape_cast %92 : vector<2x8x8xf32> to vector<16x8xf32>
    %c0_36 = arith.constant 0 : index
    %c16 = arith.constant 16 : index
    %94 = vector.load %arg11[%c0_36, %c16] : memref<16x32xf32, #tpu.memory_space<vmem>>, vector<16x8xf32>
    tpu.vector_store %arg11[%c0_36, %c16], %93 {strides = array<i32>} : memref<16x32xf32, #tpu.memory_space<vmem>>, vector<16x8xf32>,
    %95 = vector.extract_strided_slice %7 {offsets = [0, 24], sizes = [16, 8], strides = [1, 1]} : vector<16x32xf32> to vector<16x8xf32>
    %96 = vector.shape_cast %95 : vector<16x8xf32> to vector<2x8x8xf32>
    %97 = vector.extract_strided_slice %8 {offsets = [0, 24], sizes = [16, 8], strides = [1, 1]} : vector<16x32xf32> to vector<16x8xf32>
    %98 = vector.shape_cast %97 : vector<16x8xf32> to vector<2x8x8xf32>
    %99 = vector.extract_strided_slice %9 {offsets = [0, 24], sizes = [16, 8], strides = [1, 1]} : vector<16x32xf32> to vector<16x8xf32>
    %100 = vector.shape_cast %99 : vector<16x8xf32> to vector<2x8x8xf32>
    "tpu.trace_start"() <{level = 10 : i32, message = "ble,bse->bls"}> : () -> ()
    %cst_37 = arith.constant dense<0.000000e+00> : vector<2x8x8xf32>
    %101 = tpu.matmul %96, %98, %cst_37 {dimension_numbers = #tpu.dot_dimension_numbers<[2], [2], [1], [1], [0, 0, 0, 1, 1, 1], [0], [0]>} : vector<2x8x8xf32>, vector<2x8x8xf32>, vector<2x8x8xf32> -> vector<2x8x8xf32>
    "tpu.trace_stop"() : () -> ()
    %cst_38 = arith.constant 0.353553385 : f32
    %102 = vector.broadcast %cst_38 : f32 to vector<2x8x8xf32>
    %103 = arith.mulf %101, %102 : vector<2x8x8xf32>
    %104 = vector.shape_cast %10 : vector<8x8xf32> to vector<1x8x8xf32>
    %105 = vector.broadcast %104 : vector<1x8x8xf32> to vector<2x8x8xf32>
    %106 = arith.addf %103, %105 : vector<2x8x8xf32>
    %cst_39 = arith.constant dense<0xFF800000> : vector<2x8xf32>
    %107 = vector.multi_reduction <maximumf>, %106, %cst_39 [2] : vector<2x8x8xf32> to vector<2x8xf32>
    %108 = vector.shape_cast %107 : vector<2x8xf32> to vector<2x8x1xf32>
    %109 = vector.broadcast %108 : vector<2x8x1xf32> to vector<2x8x8xf32>
    %110 = arith.subf %106, %109 : vector<2x8x8xf32>
    %111 = math.exp %110 : vector<2x8x8xf32>
    %cst_40 = arith.constant dense<0.000000e+00> : vector<2x8xf32>
    %112 = vector.multi_reduction <add>, %111, %cst_40 [2] : vector<2x8x8xf32> to vector<2x8xf32>
    %113 = vector.shape_cast %112 : vector<2x8xf32> to vector<2x8x1xf32>
    %114 = tpu.reciprocal %113 {approx = true} : vector<2x8x1xf32> -> vector<2x8x1xf32>
    %115 = vector.broadcast %114 : vector<2x8x1xf32> to vector<2x8x8xf32>
    %116 = arith.mulf %111, %115 : vector<2x8x8xf32>
    %c0_41 = arith.constant 0 : index
    %c3 = arith.constant 3 : index
    %c0_42 = arith.constant 0 : index
    %c0_43 = arith.constant 0 : index
    %117 = vector.load %arg10[%c0_41, %c3, %c0_42, %c0_43] : memref<2x4x8x8xf32, #tpu.memory_space<vmem>>, vector<2x1x8x8xf32>
    %118 = vector.shape_cast %117 : vector<2x1x8x8xf32> to vector<2x8x8xf32>
    %119 = vector.shape_cast %116 : vector<2x8x8xf32> to vector<2x1x8x8xf32>
    tpu.vector_store %arg10[%c0_41, %c3, %c0_42, %c0_43], %119 {strides = array<i32>} : memref<2x4x8x8xf32, #tpu.memory_space<vmem>>, vector<2x1x8x8xf32>,
    "tpu.trace_start"() <{level = 10 : i32, message = "bls,bse->ble"}> : () -> ()
    %cst_44 = arith.constant dense<0.000000e+00> : vector<2x8x8xf32>
    %120 = tpu.matmul %116, %100, %cst_44 {dimension_numbers = #tpu.dot_dimension_numbers<[2], [1], [1], [2], [0, 0, 0, 1, 1, 2], [0], [0]>} : vector<2x8x8xf32>, vector<2x8x8xf32>, vector<2x8x8xf32> -> vector<2x8x8xf32>
    "tpu.trace_stop"() : () -> ()
    %121 = vector.shape_cast %120 : vector<2x8x8xf32> to vector<16x8xf32>
    %c0_45 = arith.constant 0 : index
    %c24 = arith.constant 24 : index
    %122 = vector.load %arg11[%c0_45, %c24] : memref<16x32xf32, #tpu.memory_space<vmem>>, vector<16x8xf32>
    tpu.vector_store %arg11[%c0_45, %c24], %121 {strides = array<i32>} : memref<16x32xf32, #tpu.memory_space<vmem>>, vector<16x8xf32>,
    %c0_46 = arith.constant 0 : index
    %c0_47 = arith.constant 0 : index
    %123 = vector.load %arg11[%c0_46, %c0_47] : memref<16x32xf32, #tpu.memory_space<vmem>>, vector<16x32xf32>
    %c0_48 = arith.constant 0 : index
    %c0_49 = arith.constant 0 : index
    %124 = vector.load %arg5[%c0_48, %c0_49] : memref<32x32xf32, #tpu.memory_space<vmem>>, vector<32x32xf32>
    %cst_50 = arith.constant dense<0.000000e+00> : vector<16x32xf32>
    %125 = tpu.matmul %123, %124, %cst_50 {dimension_numbers = #tpu.dot_dimension_numbers<[1], [0], [0], [1], [0, 0, 1, 1], [], []>} : vector<16x32xf32>, vector<32x32xf32>, vector<16x32xf32> -> vector<16x32xf32>
    %c0_51 = arith.constant 0 : index
    %c0_52 = arith.constant 0 : index
    %126 = vector.load %arg6[%c0_51, %c0_52] : memref<1x32xf32, #tpu.memory_space<vmem>>, vector<1x32xf32>
    %127 = vector.broadcast %126 : vector<1x32xf32> to vector<16x32xf32>
    %128 = arith.addf %125, %127 : vector<16x32xf32>
    %129 = arith.addf %1, %128 : vector<16x32xf32>
    %cst_53 = arith.constant dense<0.000000e+00> : vector<16xf32>
    %130 = vector.multi_reduction <add>, %129, %cst_53 [1] : vector<16x32xf32> to vector<16xf32>
    %131 = vector.shape_cast %130 : vector<16xf32> to vector<16x1xf32>
    %cst_54 = arith.constant 3.200000e+01 : f32
    %132 = vector.broadcast %cst_54 : f32 to vector<16x1xf32>
    %133 = arith.divf %131, %132 : vector<16x1xf32>
    %134 = vector.broadcast %133 : vector<16x1xf32> to vector<16x32xf32>
    %135 = arith.subf %129, %134 : vector<16x32xf32>
    %136 = arith.mulf %135, %135 : vector<16x32xf32>
    %cst_55 = arith.constant dense<0.000000e+00> : vector<16xf32>
    %137 = vector.multi_reduction <add>, %136, %cst_55 [1] : vector<16x32xf32> to vector<16xf32>
    %138 = vector.shape_cast %137 : vector<16xf32> to vector<16x1xf32>
    %cst_56 = arith.constant 3.200000e+01 : f32
    %139 = vector.broadcast %cst_56 : f32 to vector<16x1xf32>
    %140 = arith.divf %138, %139 : vector<16x1xf32>
    %141 = vector.broadcast %133 : vector<16x1xf32> to vector<16x32xf32>
    %142 = arith.subf %129, %141 : vector<16x32xf32>
    %cst_57 = arith.constant 9.99999974E-6 : f32
    %143 = vector.broadcast %cst_57 : f32 to vector<16x1xf32>
    %144 = arith.addf %140, %143 : vector<16x1xf32>
    %145 = math.rsqrt %144 : vector<16x1xf32>
    %146 = vector.broadcast %145 : vector<16x1xf32> to vector<16x32xf32>
    %147 = arith.mulf %142, %146 : vector<16x32xf32>
    %c0_58 = arith.constant 0 : index
    %c0_59 = arith.constant 0 : index
    %148 = vector.load %arg7[%c0_58, %c0_59] : memref<1x32xf32, #tpu.memory_space<vmem>>, vector<1x32xf32>
    %149 = vector.broadcast %148 : vector<1x32xf32> to vector<16x32xf32>
    %150 = arith.mulf %147, %149 : vector<16x32xf32>
    %c0_60 = arith.constant 0 : index
    %c0_61 = arith.constant 0 : index
    %151 = vector.load %arg8[%c0_60, %c0_61] : memref<1x32xf32, #tpu.memory_space<vmem>>, vector<1x32xf32>
    %152 = vector.broadcast %151 : vector<1x32xf32> to vector<16x32xf32>
    %153 = arith.addf %150, %152 : vector<16x32xf32>
    %154 = vector.shape_cast %153 : vector<16x32xf32> to vector<2x8x32xf32>
    %c0_62 = arith.constant 0 : index
    %c0_63 = arith.constant 0 : index
    %c0_64 = arith.constant 0 : index
    %155 = vector.load %arg9[%c0_62, %c0_63, %c0_64] : memref<2x8x32xf32, #tpu.memory_space<vmem>>, vector<2x8x32xf32>
    tpu.vector_store %arg9[%c0_62, %c0_63, %c0_64], %154 {strides = array<i32>} : memref<2x8x32xf32, #tpu.memory_space<vmem>>, vector<2x8x32xf32>,
    return
  }
  func.func @transform_0(%arg0: i32) -> (i32, i32, i32) {
    %c0_i32 = arith.constant 0 : i32
    %c0_i32_0 = arith.constant 0 : i32
    %c0_i32_1 = arith.constant 0 : i32
    return %arg0, %c0_i32, %c0_i32_0 : i32, i32, i32
  }
  func.func @transform_1(%arg0: i32) -> (i32, i32) {
    %c0_i32 = arith.constant 0 : i32
    %c0_i32_0 = arith.constant 0 : i32
    %c0_i32_1 = arith.constant 0 : i32
    return %c0_i32, %c0_i32_0 : i32, i32
  }
  func.func @transform_2(%arg0: i32) -> (i32, i32) {
    %c0_i32 = arith.constant 0 : i32
    %c0_i32_0 = arith.constant 0 : i32
    %c0_i32_1 = arith.constant 0 : i32
    return %c0_i32, %c0_i32_0 : i32, i32
  }
  func.func @transform_3(%arg0: i32) -> (i32, i32) {
    %c0_i32 = arith.constant 0 : i32
    %c0_i32_0 = arith.constant 0 : i32
    %c0_i32_1 = arith.constant 0 : i32
    return %c0_i32, %c0_i32_0 : i32, i32
  }
  func.func @transform_4(%arg0: i32) -> (i32, i32) {
    %c0_i32 = arith.constant 0 : i32
    %c0_i32_0 = arith.constant 0 : i32
    %c0_i32_1 = arith.constant 0 : i32
    return %c0_i32, %c0_i32_0 : i32, i32
  }
  func.func @transform_5(%arg0: i32) -> (i32, i32) {
    %c0_i32 = arith.constant 0 : i32
    %c0_i32_0 = arith.constant 0 : i32
    %c0_i32_1 = arith.constant 0 : i32
    return %c0_i32, %c0_i32_0 : i32, i32
  }
  func.func @transform_6(%arg0: i32) -> (i32, i32) {
    %c0_i32 = arith.constant 0 : i32
    %c0_i32_0 = arith.constant 0 : i32
    %c0_i32_1 = arith.constant 0 : i32
    return %c0_i32, %c0_i32_0 : i32, i32
  }
  func.func @transform_7(%arg0: i32) -> (i32, i32) {
    %c0_i32 = arith.constant 0 : i32
    %c0_i32_0 = arith.constant 0 : i32
    %c0_i32_1 = arith.constant 0 : i32
    return %c0_i32, %c0_i32_0 : i32, i32
  }
  func.func @transform_8(%arg0: i32) -> (i32, i32, i32) {
    %c0_i32 = arith.constant 0 : i32
    %c0_i32_0 = arith.constant 0 : i32
    %c0_i32_1 = arith.constant 0 : i32
    return %arg0, %c0_i32, %c0_i32_0 : i32, i32, i32
  }
  func.func @transform_9(%arg0: i32) -> (i32, i32, i32, i32) {
    %c0_i32 = arith.constant 0 : i32
    %c0_i32_0 = arith.constant 0 : i32
    %c0_i32_1 = arith.constant 0 : i32
    %c0_i32_2 = arith.constant 0 : i32
    return %arg0, %c0_i32, %c0_i32_0, %c0_i32_1 : i32, i32, i32, i32
  }
}

</mosaic_0001>

<llo_original>
// kernel: tpu_custom_call.1
$region0: #{tpu_custom_call.1}
  #allocation0 [shape = 'u32[]', space=smem, size = 0x4, offset = 0x4, fixed_abs, tag = 'smem constant byte address 0x4 - core index']
  #allocation1 [shape = 'u32[72,128]{1,0:T(1,128)}', space=vmem, size = 0x9000, scoped, tag = 'internal scratch']
  #allocation2 [shape = 'f32[16,32]{1,0:T(8,128)}', space=vmem, size = 0x2000, scoped, tag = 'scratch operand']
  %s0 = inlined_call_operand.hbm [shape: f32[2,8,32], index: 0, kind: input, shape index: {}]
  %s1 = inlined_call_operand.hbm [shape: f32[8,8], index: 1, kind: input, shape index: {}]
  %s2 = inlined_call_operand.hbm [shape: f32[32,96], index: 2, kind: input, shape index: {}]
  %s3 = inlined_call_operand.vmem [shape: f32[1,96], index: 3, kind: input, shape index: {}]
  %s4 = inlined_call_operand.hbm [shape: f32[32,32], index: 4, kind: input, shape index: {}]
  %s5 = inlined_call_operand.vmem [shape: f32[1,32], index: 5, kind: input, shape index: {}]
  %s6 = inlined_call_operand.vmem [shape: f32[1,32], index: 6, kind: input, shape index: {}]
  %s7 = inlined_call_operand.vmem [shape: f32[1,32], index: 7, kind: input, shape index: {}]
  %s8 = inlined_call_operand.hbm [shape: f32[2,8,32], index: 8, kind: output, shape index: {0}]
  %s9 = inlined_call_operand.hbm [shape: f32[2,4,8,8], index: 9, kind: output, shape index: {1}]
  %10 = xla_tuple %s8, %s9
  %s11 = sld [smem:[#allocation0]]
  $region66: #{tpu_custom_call.1} parent=0
    _
  %s13 = ssub.s32 1, %s11
  %s14 = scalar_select 0, %s13, %s11
  $region1: #{tpu_custom_call.1} parent=0
    #allocation3 [shape = 'u8[8192]{0}', space=vmem, size = 0x2000, scoped, tag = 'input window, operand 0, single buffered']
    #allocation4 [shape = 's32[1]{0}', space=sflag, size = 0x4, scoped, tag = 'scoped memory for tpu_custom_call.1']
    #allocation5 [shape = 's32[1]{0}', space=sflag, size = 0x4, scoped, tag = 'scoped memory for tpu_custom_call.1']
    #allocation6 [shape = 'u8[4096]{0}', space=vmem, size = 0x1000, scoped, tag = 'input window, operand 1, single buffered']
    #allocation7 [shape = 's32[1]{0}', space=sflag, size = 0x4, scoped, tag = 'scoped memory for tpu_custom_call.1']
    #allocation8 [shape = 'u8[16384]{0}', space=vmem, size = 0x4000, scoped, tag = 'input window, operand 2, single buffered']
    #allocation9 [shape = 'u8[16384]{0}', space=vmem, size = 0x4000, scoped, tag = 'input window, operand 4, single buffered']
    #allocation10 [shape = 's32[1]{0}', space=sflag, size = 0x4, scoped, tag = 'scoped memory for tpu_custom_call.1']
    #allocation11 [shape = 'u8[8192]{0}', space=vmem, size = 0x2000, scoped, tag = 'output window, operand 0, single buffered']
    #allocation12 [shape = 'u8[32768]{0}', space=vmem, size = 0x8000, scoped, tag = 'output window, operand 1, single buffered']
    #allocation13 [shape = 's32[1]{0}', space=sflag, size = 0x4, scoped, tag = 'scoped memory for tpu_custom_call.1']
    %15 = vsyncpa [#allocation4], 0
    %16 = vsyncpa [#allocation7], 0
    %17 = vsyncpa [#allocation10], 0
    %18 = vsyncpa [#allocation5], 0
    %19 = vsyncpa [#allocation13], 0
    // Predicated region
    $region2: #{tpu_custom_call.1} parent=1 // pred_check
      _
    $region3: #{tpu_custom_call.1} parent=1 // pred_check_branch
      %21 = sbr.rel (0) target = $region5
    $region4: #{tpu_custom_call.1} parent=1 // pred_region
      %23 = vsyncadd [#allocation4], 0
      %s24 = sshll.u32 %s0, 4
      %s25 = int_to_ptr.hbm [resolvable:$true] %s24
      %s26 = sshll.u32 [#allocation3], 4
      %s27 = int_to_ptr.vmem [resolvable:$true] %s26
      %32 = dma.hbm_to_vmem [thread:$0]  %s25, 256, %s27, [#allocation4], 128, 128, 8
    $region5: #{tpu_custom_call.1} parent=1 // pred_fallthru
      _
    // Predicated region
    $region6: #{tpu_custom_call.1} parent=1 // pred_check
      _
    $region7: #{tpu_custom_call.1} parent=1 // pred_check_branch
      %34 = sbr.rel (0) target = $region9
    $region8: #{tpu_custom_call.1} parent=1 // pred_region
      %36 = vsyncadd [#allocation7], 0
      %s38 = sshll.u32 %s1, 4
      %s39 = int_to_ptr.hbm [resolvable:$true] %s38
      %s40 = sshll.u32 [#allocation6], 4
      %s41 = int_to_ptr.vmem [resolvable:$true] %s40
      %43 = dma.hbm_to_vmem [thread:$0]  %s39, 128, %s41, [#allocation7]
    $region9: #{tpu_custom_call.1} parent=1 // pred_fallthru
      _
    // Predicated region
    $region10: #{tpu_custom_call.1} parent=1 // pred_check
      _
    $region11: #{tpu_custom_call.1} parent=1 // pred_check_branch
      %45 = sbr.rel (0) target = $region13
    $region12: #{tpu_custom_call.1} parent=1 // pred_region
      %47 = vsyncadd [#allocation7], 0
      %s48 = sshll.u32 %s2, 4
      %s49 = int_to_ptr.hbm [resolvable:$true] %s48
      %s50 = sshll.u32 [#allocation8], 4
      %s51 = int_to_ptr.vmem [resolvable:$true] %s50
      %56 = dma.hbm_to_vmem [thread:$0]  %s49, 512, %s51, [#allocation7], 128, 128, 8
    $region13: #{tpu_custom_call.1} parent=1 // pred_fallthru
      _
    // Predicated region
    $region14: #{tpu_custom_call.1} parent=1 // pred_check
      _
    $region15: #{tpu_custom_call.1} parent=1 // pred_check_branch
      %58 = sbr.rel (0) target = $region17
    $region16: #{tpu_custom_call.1} parent=1 // pred_region
      _
    $region17: #{tpu_custom_call.1} parent=1 // pred_fallthru
      _
    // Predicated region
    $region18: #{tpu_custom_call.1} parent=1 // pred_check
      _
    $region19: #{tpu_custom_call.1} parent=1 // pred_check_branch
      %60 = sbr.rel (0) target = $region21
    $region20: #{tpu_custom_call.1} parent=1 // pred_region
      %62 = vsyncadd [#allocation10], 0
      %s63 = sshll.u32 %s4, 4
      %s64 = int_to_ptr.hbm [resolvable:$true] %s63
      %s65 = sshll.u32 [#allocation9], 4
      %s66 = int_to_ptr.vmem [resolvable:$true] %s65
      %71 = dma.hbm_to_vmem [thread:$0]  %s64, 512, %s66, [#allocation10], 128, 128, 8
    $region21: #{tpu_custom_call.1} parent=1 // pred_fallthru
      _
    // Predicated region
    $region22: #{tpu_custom_call.1} parent=1 // pred_check
      _
    $region23: #{tpu_custom_call.1} parent=1 // pred_check_branch
      %73 = sbr.rel (0) target = $region25
    $region24: #{tpu_custom_call.1} parent=1 // pred_region
      _
    $region25: #{tpu_custom_call.1} parent=1 // pred_fallthru
      _
    // Predicated region
    $region26: #{tpu_custom_call.1} parent=1 // pred_check
      _
    $region27: #{tpu_custom_call.1} parent=1 // pred_check_branch
      %75 = sbr.rel (0) target = $region29
    $region28: #{tpu_custom_call.1} parent=1 // pred_region
      _
    $region29: #{tpu_custom_call.1} parent=1 // pred_fallthru
      _
    // Predicated region
    $region30: #{tpu_custom_call.1} parent=1 // pred_check
      _
    $region31: #{tpu_custom_call.1} parent=1 // pred_check_branch
      %77 = sbr.rel (0) target = $region33
    $region32: #{tpu_custom_call.1} parent=1 // pred_region
      _
    $region33: #{tpu_custom_call.1} parent=1 // pred_fallthru
      _
    // Predicated region
    $region34: #{tpu_custom_call.1} parent=1 // pred_check
      _
    $region35: #{tpu_custom_call.1} parent=1 // pred_check_branch
      %79 = sbr.rel (0) target = $region37
    $region36: #{tpu_custom_call.1} parent=1 // pred_region
      %81 = dma.done [#allocation4], 256
    $region37: #{tpu_custom_call.1} parent=1 // pred_fallthru
      _
    // Predicated region
    $region38: #{tpu_custom_call.1} parent=1 // pred_check
      _
    $region39: #{tpu_custom_call.1} parent=1 // pred_check_branch
      %83 = sbr.rel (0) target = $region41
    $region40: #{tpu_custom_call.1} parent=1 // pred_region
      %85 = dma.done [#allocation7], 128
    $region41: #{tpu_custom_call.1} parent=1 // pred_fallthru
      _
    // Predicated region
    $region42: #{tpu_custom_call.1} parent=1 // pred_check
      _
    $region43: #{tpu_custom_call.1} parent=1 // pred_check_branch
      %87 = sbr.rel (0) target = $region45
    $region44: #{tpu_custom_call.1} parent=1 // pred_region
      %89 = dma.done [#allocation7], 512
    $region45: #{tpu_custom_call.1} parent=1 // pred_fallthru
      _
    // Predicated region
    $region46: #{tpu_custom_call.1} parent=1 // pred_check
      _
    $region47: #{tpu_custom_call.1} parent=1 // pred_check_branch
      %91 = sbr.rel (0) target = $region49
    $region48: #{tpu_custom_call.1} parent=1 // pred_region
      %93 = dma.done [#allocation10], 512
    $region49: #{tpu_custom_call.1} parent=1 // pred_fallthru
      _
    %v94 = vld [vmem:[#allocation3] sm:$0xff]
    %v95 = vld [vmem:[#allocation3 + $0x8] sm:$0xff]
    %v96 = vld [vmem:[#allocation8] sm:$0xff]
    %v97 = vld [vmem:[#allocation8 + $0x8] sm:$0xff]
    %v98 = vld [vmem:[#allocation8 + $0x10] sm:$0xff]
    %v99 = vld [vmem:[#allocation8 + $0x18] sm:$0xff]
    %v100 = vld [vmem:[%s3] sm:$0x1]
    %v102 = vperm.slane %v100, 0
    %vm104 = vcmask 261120
    %v106 = vsel %vm104, %v94, 0
    %v109 = vsel %vm104, %v95, 0
    %111 = vmatpush.msra.mxu0 0.0
    %112 = vmatpush.msra.mxu0 0.0
    %113 = vmatpush.msra.mxu0 0.0
    %114 = vmatpush.msra.mxu0 0.0
    %115 = vmatpush.msra.mxu0 0.0
    %116 = vmatpush.msra.mxu0 0.0
    %117 = vmatpush.msra.mxu0 0.0
    %118 = vmatpush.msra.mxu0 0.0
    %119 = vmatpush.msra.mxu0 0.0
    %120 = vmatpush.msra.mxu0 0.0
    %121 = vmatpush.msra.mxu0 0.0
    %122 = vmatpush.msra.mxu0 0.0
    %123 = vmatpush.msra.mxu0 %v99
    %124 = vmatpush.msra.mxu0 %v98
    %125 = vmatpush.msra.mxu0 %v97
    %126 = vmatpush.msra.mxu0 %v96
    %127 = vmatmul.f32.gmra.mxu0 %v106
    %v128 = vpop.f32.mrf.mxu0
    %v129 = vadd.f32 %v102, %v128
    %130 = vmatmul.f32.gmra.mxu0 %v109
    %v131 = vpop.f32.mrf.mxu0
    %v132 = vadd.f32 %v102, %v131
    %133 = vdwg.mxu0
    %v134 = vld [vmem:[#allocation6] sm:$0xff]
    %136 = vrot.lane.b32.xlu0 %v129, 96
    %v137 = vpop.permute.xlu0 %136
    %vm138 = vcmask 64512
    %v139 = vsel %vm138, %v129, 0
    %v141 = vsel %vm138, %v137, 0
    %143 = vmatpush.xpose.msra.mxu0 0.0
    %144 = vmatpush.xpose.msra.mxu0 0.0
    %145 = vmatpush.xpose.msra.mxu0 0.0
    %146 = vmatpush.xpose.msra.mxu0 0.0
    %147 = vmatpush.xpose.msra.mxu0 0.0
    %148 = vmatpush.xpose.msra.mxu0 0.0
    %149 = vmatpush.xpose.msra.mxu0 0.0
    %150 = vmatpush.xpose.msra.mxu0 0.0
    %151 = vmatpush.xpose.msra.mxu0 0.0
    %152 = vmatpush.xpose.msra.mxu0 0.0
    %153 = vmatpush.xpose.msra.mxu0 0.0
    %154 = vmatpush.xpose.msra.mxu0 0.0
    %155 = vmatpush.xpose.msra.mxu0 0.0
    %156 = vmatpush.xpose.msra.mxu0 0.0
    %157 = vmatpush.xpose.msra.mxu0 0.0
    %158 = vmatpush.xpose.msra.mxu0 %v141
    %159 = vmatmul.f32.gmra.mxu0 %v139
    %v160 = vpop.f32.mrf.mxu0
    %v161 = vadd.f32 0.0, %v160
    %162 = vdwg.mxu0
    %164 = vrot.lane.b32.xlu0 %v132, 96
    %v165 = vpop.permute.xlu0 %164
    %v166 = vsel %vm138, %v132, 0
    %v168 = vsel %vm138, %v165, 0
    %170 = vmatpush.xpose.msra.mxu0 0.0
    %171 = vmatpush.xpose.msra.mxu0 0.0
    %172 = vmatpush.xpose.msra.mxu0 0.0
    %173 = vmatpush.xpose.msra.mxu0 0.0
    %174 = vmatpush.xpose.msra.mxu0 0.0
    %175 = vmatpush.xpose.msra.mxu0 0.0
    %176 = vmatpush.xpose.msra.mxu0 0.0
    %177 = vmatpush.xpose.msra.mxu0 0.0
    %178 = vmatpush.xpose.msra.mxu0 0.0
    %179 = vmatpush.xpose.msra.mxu0 0.0
    %180 = vmatpush.xpose.msra.mxu0 0.0
    %181 = vmatpush.xpose.msra.mxu0 0.0
    %182 = vmatpush.xpose.msra.mxu0 0.0
    %183 = vmatpush.xpose.msra.mxu0 0.0
    %184 = vmatpush.xpose.msra.mxu0 0.0
    %185 = vmatpush.xpose.msra.mxu0 %v168
    %186 = vmatmul.f32.gmra.mxu0 %v166
    %v187 = vpop.f32.mrf.mxu0
    %v188 = vadd.f32 0.0, %v187
    %189 = vdwg.mxu0
    %v190 = vmul.f32 %v161, 0.35355338
    %v191 = vmul.f32 %v188, 0.35355338
    %v192 = vadd.f32 %v190, %v134
    %v193 = vadd.f32 %v191, %v134
    %v194 = vsel %vm138, %v192, -inf
    %195 = vmax.xlane.f32.xlu0 %v194
    %v196 = vpop.xlane.xlu0 %195
    %v197 = vsel %vm138, %v193, -inf
    %198 = vmax.xlane.f32.xlu0 %v197
    %v199 = vpop.xlane.xlu0 %198
    %v200 = vsub.f32 %v192, %v196
    %v201 = vsub.f32 %v193, %v199
    %v202 = vmul.f32 %v200, 1.442695
    %v203 = vpow.pop %v202
    %v204 = vmul.f32 %v201, 1.442695
    %v205 = vpow.pop %v204
    %v206 = vsel %vm138, %v203, 0.0
    %207 = vadd.xlane.f32.xlu0 %v206
    %v208 = vpop.xlane.xlu0 %207
    %v209 = vsel %vm138, %v205, 0.0
    %210 = vadd.xlane.f32.xlu0 %v209
    %v211 = vpop.xlane.xlu0 %210
    %v212 = vrcp.pop %v208
    %v213 = vrcp.pop %v211
    %v214 = vmul.f32 %v203, %v212
    %v215 = vmul.f32 %v205, %v213
    %216 = vst.msk [vmem:[#allocation12] sm:$0xff] %vm138, %v214
    %217 = vst.msk [vmem:[#allocation12 + $0x20] sm:$0xff] %vm138, %v215
    %218 = vrot.lane.b32.xlu0 %v129, 64
    %v219 = vpop.permute.xlu0 %218
    %v222 = vsel %vm138, %v214, 0
    %224 = vmatpush.msra.mxu0 0.0
    %225 = vmatpush.msra.mxu0 0.0
    %226 = vmatpush.msra.mxu0 0.0
    %227 = vmatpush.msra.mxu0 0.0
    %228 = vmatpush.msra.mxu0 0.0
    %229 = vmatpush.msra.mxu0 0.0
    %230 = vmatpush.msra.mxu0 0.0
    %231 = vmatpush.msra.mxu0 0.0
    %232 = vmatpush.msra.mxu0 0.0
    %233 = vmatpush.msra.mxu0 0.0
    %234 = vmatpush.msra.mxu0 0.0
    %235 = vmatpush.msra.mxu0 0.0
    %236 = vmatpush.msra.mxu0 0.0
    %237 = vmatpush.msra.mxu0 0.0
    %238 = vmatpush.msra.mxu0 0.0
    %239 = vmatpush.msra.mxu0 %v219
    %240 = vmatmul.f32.gmra.mxu0 %v222
    %v241 = vpop.f32.mrf.mxu0
    %v242 = vadd.f32 0.0, %v241
    %243 = vdwg.mxu0
    %244 = vrot.lane.b32.xlu0 %v132, 64
    %v245 = vpop.permute.xlu0 %244
    %v248 = vsel %vm138, %v215, 0
    %250 = vmatpush.msra.mxu0 0.0
    %251 = vmatpush.msra.mxu0 0.0
    %252 = vmatpush.msra.mxu0 0.0
    %253 = vmatpush.msra.mxu0 0.0
    %254 = vmatpush.msra.mxu0 0.0
    %255 = vmatpush.msra.mxu0 0.0
    %256 = vmatpush.msra.mxu0 0.0
    %257 = vmatpush.msra.mxu0 0.0
    %258 = vmatpush.msra.mxu0 0.0
    %259 = vmatpush.msra.mxu0 0.0
    %260 = vmatpush.msra.mxu0 0.0
    %261 = vmatpush.msra.mxu0 0.0
    %262 = vmatpush.msra.mxu0 0.0
    %263 = vmatpush.msra.mxu0 0.0
    %264 = vmatpush.msra.mxu0 0.0
    %265 = vmatpush.msra.mxu0 %v245
    %266 = vmatmul.f32.gmra.mxu0 %v248
    %v267 = vpop.f32.mrf.mxu0
    %v268 = vadd.f32 0.0, %v267
    %269 = vdwg.mxu0
    %270 = vst.msk [vmem:[#allocation2] sm:$0xff] %vm138, %v242
    %271 = vst.msk [vmem:[#allocation2 + $0x8] sm:$0xff] %vm138, %v268
    %272 = vrot.lane.b32.xlu0 %v129, 120
    %v273 = vpop.permute.xlu0 %272
    %274 = vrot.lane.b32.xlu0 %v129, 88
    %v275 = vpop.permute.xlu0 %274
    %v276 = vsel %vm138, %v273, 0
    %v278 = vsel %vm138, %v275, 0
    %280 = vmatpush.xpose.msra.mxu0 0.0
    %281 = vmatpush.xpose.msra.mxu0 0.0
    %282 = vmatpush.xpose.msra.mxu0 0.0
    %283 = vmatpush.xpose.msra.mxu0 0.0
    %284 = vmatpush.xpose.msra.mxu0 0.0
    %285 = vmatpush.xpose.msra.mxu0 0.0
    %286 = vmatpush.xpose.msra.mxu0 0.0
    %287 = vmatpush.xpose.msra.mxu0 0.0
    %288 = vmatpush.xpose.msra.mxu0 0.0
    %289 = vmatpush.xpose.msra.mxu0 0.0
    %290 = vmatpush.xpose.msra.mxu0 0.0
    %291 = vmatpush.xpose.msra.mxu0 0.0
    %292 = vmatpush.xpose.msra.mxu0 0.0
    %293 = vmatpush.xpose.msra.mxu0 0.0
    %294 = vmatpush.xpose.msra.mxu0 0.0
    %295 = vmatpush.xpose.msra.mxu0 %v278
    %296 = vmatmul.f32.gmra.mxu0 %v276
    %v297 = vpop.f32.mrf.mxu0
    %v298 = vadd.f32 0.0, %v297
    %299 = vdwg.mxu0
    %300 = vrot.lane.b32.xlu0 %v132, 120
    %v301 = vpop.permute.xlu0 %300
    %302 = vrot.lane.b32.xlu0 %v132, 88
    %v303 = vpop.permute.xlu0 %302
    %v304 = vsel %vm138, %v301, 0
    %v306 = vsel %vm138, %v303, 0
    %308 = vmatpush.xpose.msra.mxu0 0.0
    %309 = vmatpush.xpose.msra.mxu0 0.0
    %310 = vmatpush.xpose.msra.mxu0 0.0
    %311 = vmatpush.xpose.msra.mxu0 0.0
    %312 = vmatpush.xpose.msra.mxu0 0.0
    %313 = vmatpush.xpose.msra.mxu0 0.0
    %314 = vmatpush.xpose.msra.mxu0 0.0
    %315 = vmatpush.xpose.msra.mxu0 0.0
    %316 = vmatpush.xpose.msra.mxu0 0.0
    %317 = vmatpush.xpose.msra.mxu0 0.0
    %318 = vmatpush.xpose.msra.mxu0 0.0
    %319 = vmatpush.xpose.msra.mxu0 0.0
    %320 = vmatpush.xpose.msra.mxu0 0.0
    %321 = vmatpush.xpose.msra.mxu0 0.0
    %322 = vmatpush.xpose.msra.mxu0 0.0
    %323 = vmatpush.xpose.msra.mxu0 %v306
    %324 = vmatmul.f32.gmra.mxu0 %v304
    %v325 = vpop.f32.mrf.mxu0
    %v326 = vadd.f32 0.0, %v325
    %327 = vdwg.mxu0
    %v328 = vmul.f32 %v298, 0.35355338
    %v329 = vmul.f32 %v326, 0.35355338
    %v330 = vadd.f32 %v328, %v134
    %v331 = vadd.f32 %v329, %v134
    %v332 = vsel %vm138, %v330, -inf
    %333 = vmax.xlane.f32.xlu0 %v332
    %v334 = vpop.xlane.xlu0 %333
    %v335 = vsel %vm138, %v331, -inf
    %336 = vmax.xlane.f32.xlu0 %v335
    %v337 = vpop.xlane.xlu0 %336
    %v338 = vsub.f32 %v330, %v334
    %v339 = vsub.f32 %v331, %v337
    %v340 = vmul.f32 %v338, 1.442695
    %v341 = vpow.pop %v340
    %v342 = vmul.f32 %v339, 1.442695
    %v343 = vpow.pop %v342
    %v344 = vsel %vm138, %v341, 0.0
    %345 = vadd.xlane.f32.xlu0 %v344
    %v346 = vpop.xlane.xlu0 %345
    %v347 = vsel %vm138, %v343, 0.0
    %348 = vadd.xlane.f32.xlu0 %v347
    %v349 = vpop.xlane.xlu0 %348
    %v350 = vrcp.pop %v346
    %v351 = vrcp.pop %v349
    %v352 = vmul.f32 %v341, %v350
    %v353 = vmul.f32 %v343, %v351
    %s354 = scalar_lea.vmem [#allocation12], 8
    %355 = vst.msk [vmem:[%s354] sm:$0xff] %vm138, %v352
    %356 = vst.msk [vmem:[%s354 + $0x20] sm:$0xff] %vm138, %v353
    %357 = vrot.lane.b32.xlu0 %v129, 56
    %v358 = vpop.permute.xlu0 %357
    %v361 = vsel %vm138, %v352, 0
    %363 = vmatpush.msra.mxu0 0.0
    %364 = vmatpush.msra.mxu0 0.0
    %365 = vmatpush.msra.mxu0 0.0
    %366 = vmatpush.msra.mxu0 0.0
    %367 = vmatpush.msra.mxu0 0.0
    %368 = vmatpush.msra.mxu0 0.0
    %369 = vmatpush.msra.mxu0 0.0
    %370 = vmatpush.msra.mxu0 0.0
    %371 = vmatpush.msra.mxu0 0.0
    %372 = vmatpush.msra.mxu0 0.0
    %373 = vmatpush.msra.mxu0 0.0
    %374 = vmatpush.msra.mxu0 0.0
    %375 = vmatpush.msra.mxu0 0.0
    %376 = vmatpush.msra.mxu0 0.0
    %377 = vmatpush.msra.mxu0 0.0
    %378 = vmatpush.msra.mxu0 %v358
    %379 = vmatmul.f32.gmra.mxu0 %v361
    %v380 = vpop.f32.mrf.mxu0
    %v381 = vadd.f32 0.0, %v380
    %382 = vdwg.mxu0
    %383 = vrot.lane.b32.xlu0 %v132, 56
    %v384 = vpop.permute.xlu0 %383
    %v387 = vsel %vm138, %v353, 0
    %389 = vmatpush.msra.mxu0 0.0
    %390 = vmatpush.msra.mxu0 0.0
    %391 = vmatpush.msra.mxu0 0.0
    %392 = vmatpush.msra.mxu0 0.0
    %393 = vmatpush.msra.mxu0 0.0
    %394 = vmatpush.msra.mxu0 0.0
    %395 = vmatpush.msra.mxu0 0.0
    %396 = vmatpush.msra.mxu0 0.0
    %397 = vmatpush.msra.mxu0 0.0
    %398 = vmatpush.msra.mxu0 0.0
    %399 = vmatpush.msra.mxu0 0.0
    %400 = vmatpush.msra.mxu0 0.0
    %401 = vmatpush.msra.mxu0 0.0
    %402 = vmatpush.msra.mxu0 0.0
    %403 = vmatpush.msra.mxu0 0.0
    %404 = vmatpush.msra.mxu0 %v384
    %405 = vmatmul.f32.gmra.mxu0 %v387
    %v406 = vpop.f32.mrf.mxu0
    %v407 = vadd.f32 0.0, %v406
    %408 = vdwg.mxu0
    %411 = vrot.lane.b32.xlu0 %v381, 8
    %v412 = vpop.permute.xlu0 %411
    %413 = vrot.lane.b32.xlu0 %v407, 8
    %v414 = vpop.permute.xlu0 %413
    %vm417 = vcmask 130112
    %418 = vst.msk [vmem:[#allocation2] sm:$0xff] %vm417, %v412
    %419 = vst.msk [vmem:[#allocation2 + $0x8] sm:$0xff] %vm417, %v414
    %420 = vrot.lane.b32.xlu0 %v129, 112
    %v421 = vpop.permute.xlu0 %420
    %422 = vrot.lane.b32.xlu0 %v129, 80
    %v423 = vpop.permute.xlu0 %422
    %v424 = vsel %vm138, %v421, 0
    %v426 = vsel %vm138, %v423, 0
    %428 = vmatpush.xpose.msra.mxu0 0.0
    %429 = vmatpush.xpose.msra.mxu0 0.0
    %430 = vmatpush.xpose.msra.mxu0 0.0
    %431 = vmatpush.xpose.msra.mxu0 0.0
    %432 = vmatpush.xpose.msra.mxu0 0.0
    %433 = vmatpush.xpose.msra.mxu0 0.0
    %434 = vmatpush.xpose.msra.mxu0 0.0
    %435 = vmatpush.xpose.msra.mxu0 0.0
    %436 = vmatpush.xpose.msra.mxu0 0.0
    %437 = vmatpush.xpose.msra.mxu0 0.0
    %438 = vmatpush.xpose.msra.mxu0 0.0
    %439 = vmatpush.xpose.msra.mxu0 0.0
    %440 = vmatpush.xpose.msra.mxu0 0.0
    %441 = vmatpush.xpose.msra.mxu0 0.0
    %442 = vmatpush.xpose.msra.mxu0 0.0
    %443 = vmatpush.xpose.msra.mxu0 %v426
    %444 = vmatmul.f32.gmra.mxu0 %v424
    %v445 = vpop.f32.mrf.mxu0
    %v446 = vadd.f32 0.0, %v445
    %447 = vdwg.mxu0
    %448 = vrot.lane.b32.xlu0 %v132, 112
    %v449 = vpop.permute.xlu0 %448
    %450 = vrot.lane.b32.xlu0 %v132, 80
    %v451 = vpop.permute.xlu0 %450
    %v452 = vsel %vm138, %v449, 0
    %v454 = vsel %vm138, %v451, 0
    %456 = vmatpush.xpose.msra.mxu0 0.0
    %457 = vmatpush.xpose.msra.mxu0 0.0
    %458 = vmatpush.xpose.msra.mxu0 0.0
    %459 = vmatpush.xpose.msra.mxu0 0.0
    %460 = vmatpush.xpose.msra.mxu0 0.0
    %461 = vmatpush.xpose.msra.mxu0 0.0
    %462 = vmatpush.xpose.msra.mxu0 0.0
    %463 = vmatpush.xpose.msra.mxu0 0.0
    %464 = vmatpush.xpose.msra.mxu0 0.0
    %465 = vmatpush.xpose.msra.mxu0 0.0
    %466 = vmatpush.xpose.msra.mxu0 0.0
    %467 = vmatpush.xpose.msra.mxu0 0.0
    %468 = vmatpush.xpose.msra.mxu0 0.0
    %469 = vmatpush.xpose.msra.mxu0 0.0
    %470 = vmatpush.xpose.msra.mxu0 0.0
    %471 = vmatpush.xpose.msra.mxu0 %v454
    %472 = vmatmul.f32.gmra.mxu0 %v452
    %v473 = vpop.f32.mrf.mxu0
    %v474 = vadd.f32 0.0, %v473
    %475 = vdwg.mxu0
    %v476 = vmul.f32 %v446, 0.35355338
    %v477 = vmul.f32 %v474, 0.35355338
    %v478 = vadd.f32 %v476, %v134
    %v479 = vadd.f32 %v477, %v134
    %v480 = vsel %vm138, %v478, -inf
    %481 = vmax.xlane.f32.xlu0 %v480
    %v482 = vpop.xlane.xlu0 %481
    %v483 = vsel %vm138, %v479, -inf
    %484 = vmax.xlane.f32.xlu0 %v483
    %v485 = vpop.xlane.xlu0 %484
    %v486 = vsub.f32 %v478, %v482
    %v487 = vsub.f32 %v479, %v485
    %v488 = vmul.f32 %v486, 1.442695
    %v489 = vpow.pop %v488
    %v490 = vmul.f32 %v487, 1.442695
    %v491 = vpow.pop %v490
    %v492 = vsel %vm138, %v489, 0.0
    %493 = vadd.xlane.f32.xlu0 %v492
    %v494 = vpop.xlane.xlu0 %493
    %v495 = vsel %vm138, %v491, 0.0
    %496 = vadd.xlane.f32.xlu0 %v495
    %v497 = vpop.xlane.xlu0 %496
    %v498 = vrcp.pop %v494
    %v499 = vrcp.pop %v497
    %v500 = vmul.f32 %v489, %v498
    %v501 = vmul.f32 %v491, %v499
    %s502 = scalar_lea.vmem [#allocation12], 16
    %503 = vst.msk [vmem:[%s502] sm:$0xff] %vm138, %v500
    %504 = vst.msk [vmem:[%s502 + $0x20] sm:$0xff] %vm138, %v501
    %505 = vrot.lane.b32.xlu0 %v129, 48
    %v506 = vpop.permute.xlu0 %505
    %v509 = vsel %vm138, %v500, 0
    %511 = vmatpush.msra.mxu0 0.0
    %512 = vmatpush.msra.mxu0 0.0
    %513 = vmatpush.msra.mxu0 0.0
    %514 = vmatpush.msra.mxu0 0.0
    %515 = vmatpush.msra.mxu0 0.0
    %516 = vmatpush.msra.mxu0 0.0
    %517 = vmatpush.msra.mxu0 0.0
    %518 = vmatpush.msra.mxu0 0.0
    %519 = vmatpush.msra.mxu0 0.0
    %520 = vmatpush.msra.mxu0 0.0
    %521 = vmatpush.msra.mxu0 0.0
    %522 = vmatpush.msra.mxu0 0.0
    %523 = vmatpush.msra.mxu0 0.0
    %524 = vmatpush.msra.mxu0 0.0
    %525 = vmatpush.msra.mxu0 0.0
    %526 = vmatpush.msra.mxu0 %v506
    %527 = vmatmul.f32.gmra.mxu0 %v509
    %v528 = vpop.f32.mrf.mxu0
    %v529 = vadd.f32 0.0, %v528
    %530 = vdwg.mxu0
    %531 = vrot.lane.b32.xlu0 %v132, 48
    %v532 = vpop.permute.xlu0 %531
    %v535 = vsel %vm138, %v501, 0
    %537 = vmatpush.msra.mxu0 0.0
    %538 = vmatpush.msra.mxu0 0.0
    %539 = vmatpush.msra.mxu0 0.0
    %540 = vmatpush.msra.mxu0 0.0
    %541 = vmatpush.msra.mxu0 0.0
    %542 = vmatpush.msra.mxu0 0.0
    %543 = vmatpush.msra.mxu0 0.0
    %544 = vmatpush.msra.mxu0 0.0
    %545 = vmatpush.msra.mxu0 0.0
    %546 = vmatpush.msra.mxu0 0.0
    %547 = vmatpush.msra.mxu0 0.0
    %548 = vmatpush.msra.mxu0 0.0
    %549 = vmatpush.msra.mxu0 0.0
    %550 = vmatpush.msra.mxu0 0.0
    %551 = vmatpush.msra.mxu0 0.0
    %552 = vmatpush.msra.mxu0 %v532
    %553 = vmatmul.f32.gmra.mxu0 %v535
    %v554 = vpop.f32.mrf.mxu0
    %v555 = vadd.f32 0.0, %v554
    %556 = vdwg.mxu0
    %559 = vrot.lane.b32.xlu0 %v529, 16
    %v560 = vpop.permute.xlu0 %559
    %561 = vrot.lane.b32.xlu0 %v555, 16
    %v562 = vpop.permute.xlu0 %561
    %vm565 = vcmask 195712
    %566 = vst.msk [vmem:[#allocation2] sm:$0xff] %vm565, %v560
    %567 = vst.msk [vmem:[#allocation2 + $0x8] sm:$0xff] %vm565, %v562
    %568 = vrot.lane.b32.xlu0 %v129, 104
    %v569 = vpop.permute.xlu0 %568
    %570 = vrot.lane.b32.xlu0 %v129, 72
    %v571 = vpop.permute.xlu0 %570
    %v572 = vsel %vm138, %v569, 0
    %v574 = vsel %vm138, %v571, 0
    %576 = vmatpush.xpose.msra.mxu0 0.0
    %577 = vmatpush.xpose.msra.mxu0 0.0
    %578 = vmatpush.xpose.msra.mxu0 0.0
    %579 = vmatpush.xpose.msra.mxu0 0.0
    %580 = vmatpush.xpose.msra.mxu0 0.0
    %581 = vmatpush.xpose.msra.mxu0 0.0
    %582 = vmatpush.xpose.msra.mxu0 0.0
    %583 = vmatpush.xpose.msra.mxu0 0.0
    %584 = vmatpush.xpose.msra.mxu0 0.0
    %585 = vmatpush.xpose.msra.mxu0 0.0
    %586 = vmatpush.xpose.msra.mxu0 0.0
    %587 = vmatpush.xpose.msra.mxu0 0.0
    %588 = vmatpush.xpose.msra.mxu0 0.0
    %589 = vmatpush.xpose.msra.mxu0 0.0
    %590 = vmatpush.xpose.msra.mxu0 0.0
    %591 = vmatpush.xpose.msra.mxu0 %v574
    %592 = vmatmul.f32.gmra.mxu0 %v572
    %v593 = vpop.f32.mrf.mxu0
    %v594 = vadd.f32 0.0, %v593
    %595 = vdwg.mxu0
    %596 = vrot.lane.b32.xlu0 %v132, 104
    %v597 = vpop.permute.xlu0 %596
    %598 = vrot.lane.b32.xlu0 %v132, 72
    %v599 = vpop.permute.xlu0 %598
    %v600 = vsel %vm138, %v597, 0
    %v602 = vsel %vm138, %v599, 0
    %604 = vmatpush.xpose.msra.mxu0 0.0
    %605 = vmatpush.xpose.msra.mxu0 0.0
    %606 = vmatpush.xpose.msra.mxu0 0.0
    %607 = vmatpush.xpose.msra.mxu0 0.0
    %608 = vmatpush.xpose.msra.mxu0 0.0
    %609 = vmatpush.xpose.msra.mxu0 0.0
    %610 = vmatpush.xpose.msra.mxu0 0.0
    %611 = vmatpush.xpose.msra.mxu0 0.0
    %612 = vmatpush.xpose.msra.mxu0 0.0
    %613 = vmatpush.xpose.msra.mxu0 0.0
    %614 = vmatpush.xpose.msra.mxu0 0.0
    %615 = vmatpush.xpose.msra.mxu0 0.0
    %616 = vmatpush.xpose.msra.mxu0 0.0
    %617 = vmatpush.xpose.msra.mxu0 0.0
    %618 = vmatpush.xpose.msra.mxu0 0.0
    %619 = vmatpush.xpose.msra.mxu0 %v602
    %620 = vmatmul.f32.gmra.mxu0 %v600
    %v621 = vpop.f32.mrf.mxu0
    %v622 = vadd.f32 0.0, %v621
    %623 = vdwg.mxu0
    %v624 = vmul.f32 %v594, 0.35355338
    %v625 = vmul.f32 %v622, 0.35355338
    %v626 = vadd.f32 %v624, %v134
    %v627 = vadd.f32 %v625, %v134
    %v628 = vsel %vm138, %v626, -inf
    %629 = vmax.xlane.f32.xlu0 %v628
    %v630 = vpop.xlane.xlu0 %629
    %v631 = vsel %vm138, %v627, -inf
    %632 = vmax.xlane.f32.xlu0 %v631
    %v633 = vpop.xlane.xlu0 %632
    %v634 = vsub.f32 %v626, %v630
    %v635 = vsub.f32 %v627, %v633
    %v636 = vmul.f32 %v634, 1.442695
    %v637 = vpow.pop %v636
    %v638 = vmul.f32 %v635, 1.442695
    %v639 = vpow.pop %v638
    %v640 = vsel %vm138, %v637, 0.0
    %641 = vadd.xlane.f32.xlu0 %v640
    %v642 = vpop.xlane.xlu0 %641
    %v643 = vsel %vm138, %v639, 0.0
    %644 = vadd.xlane.f32.xlu0 %v643
    %v645 = vpop.xlane.xlu0 %644
    %v646 = vrcp.pop %v642
    %v647 = vrcp.pop %v645
    %v648 = vmul.f32 %v637, %v646
    %v649 = vmul.f32 %v639, %v647
    %s650 = scalar_lea.vmem [#allocation12], 24
    %651 = vst.msk [vmem:[%s650] sm:$0xff] %vm138, %v648
    %652 = vst.msk [vmem:[%s650 + $0x20] sm:$0xff] %vm138, %v649
    %653 = vrot.lane.b32.xlu0 %v129, 40
    %v654 = vpop.permute.xlu0 %653
    %v657 = vsel %vm138, %v648, 0
    %659 = vmatpush.msra.mxu0 0.0
    %660 = vmatpush.msra.mxu0 0.0
    %661 = vmatpush.msra.mxu0 0.0
    %662 = vmatpush.msra.mxu0 0.0
    %663 = vmatpush.msra.mxu0 0.0
    %664 = vmatpush.msra.mxu0 0.0
    %665 = vmatpush.msra.mxu0 0.0
    %666 = vmatpush.msra.mxu0 0.0
    %667 = vmatpush.msra.mxu0 0.0
    %668 = vmatpush.msra.mxu0 0.0
    %669 = vmatpush.msra.mxu0 0.0
    %670 = vmatpush.msra.mxu0 0.0
    %671 = vmatpush.msra.mxu0 0.0
    %672 = vmatpush.msra.mxu0 0.0
    %673 = vmatpush.msra.mxu0 0.0
    %674 = vmatpush.msra.mxu0 %v654
    %675 = vmatmul.f32.gmra.mxu0 %v657
    %v676 = vpop.f32.mrf.mxu0
    %v677 = vadd.f32 0.0, %v676
    %678 = vdwg.mxu0
    %679 = vrot.lane.b32.xlu0 %v132, 40
    %v680 = vpop.permute.xlu0 %679
    %v683 = vsel %vm138, %v649, 0
    %685 = vmatpush.msra.mxu0 0.0
    %686 = vmatpush.msra.mxu0 0.0
    %687 = vmatpush.msra.mxu0 0.0
    %688 = vmatpush.msra.mxu0 0.0
    %689 = vmatpush.msra.mxu0 0.0
    %690 = vmatpush.msra.mxu0 0.0
    %691 = vmatpush.msra.mxu0 0.0
    %692 = vmatpush.msra.mxu0 0.0
    %693 = vmatpush.msra.mxu0 0.0
    %694 = vmatpush.msra.mxu0 0.0
    %695 = vmatpush.msra.mxu0 0.0
    %696 = vmatpush.msra.mxu0 0.0
    %697 = vmatpush.msra.mxu0 0.0
    %698 = vmatpush.msra.mxu0 0.0
    %699 = vmatpush.msra.mxu0 0.0
    %700 = vmatpush.msra.mxu0 %v680
    %701 = vmatmul.f32.gmra.mxu0 %v683
    %v702 = vpop.f32.mrf.mxu0
    %v703 = vadd.f32 0.0, %v702
    %704 = vdwg.mxu0
    %707 = vrot.lane.b32.xlu0 %v677, 24
    %v708 = vpop.permute.xlu0 %707
    %709 = vrot.lane.b32.xlu0 %v703, 24
    %v710 = vpop.permute.xlu0 %709
    %vm713 = vcmask 261312
    %714 = vst.msk [vmem:[#allocation2] sm:$0xff] %vm713, %v708
    %715 = vst.msk [vmem:[#allocation2 + $0x8] sm:$0xff] %vm713, %v710
    %v716 = vld [vmem:[#allocation2] sm:$0xff]
    %v717 = vld [vmem:[#allocation2 + $0x8] sm:$0xff]
    %v718 = vld [vmem:[#allocation9] sm:$0xff]
    %v719 = vld [vmem:[#allocation9 + $0x8] sm:$0xff]
    %v720 = vld [vmem:[#allocation9 + $0x10] sm:$0xff]
    %v721 = vld [vmem:[#allocation9 + $0x18] sm:$0xff]
    %v722 = vld [vmem:[%s5] sm:$0x1]
    %v724 = vperm.slane %v722, 0
    %v727 = vsel %vm104, %v716, 0
    %v730 = vsel %vm104, %v717, 0
    %732 = vmatpush.msra.mxu0 0.0
    %733 = vmatpush.msra.mxu0 0.0
    %734 = vmatpush.msra.mxu0 0.0
    %735 = vmatpush.msra.mxu0 0.0
    %736 = vmatpush.msra.mxu0 0.0
    %737 = vmatpush.msra.mxu0 0.0
    %738 = vmatpush.msra.mxu0 0.0
    %739 = vmatpush.msra.mxu0 0.0
    %740 = vmatpush.msra.mxu0 0.0
    %741 = vmatpush.msra.mxu0 0.0
    %742 = vmatpush.msra.mxu0 0.0
    %743 = vmatpush.msra.mxu0 0.0
    %744 = vmatpush.msra.mxu0 %v721
    %745 = vmatpush.msra.mxu0 %v720
    %746 = vmatpush.msra.mxu0 %v719
    %747 = vmatpush.msra.mxu0 %v718
    %748 = vmatmul.f32.gmra.mxu0 %v727
    %v749 = vpop.f32.mrf.mxu0
    %v750 = vadd.f32 %v724, %v749
    %751 = vmatmul.f32.gmra.mxu0 %v730
    %v752 = vpop.f32.mrf.mxu0
    %v753 = vadd.f32 %v724, %v752
    %754 = vdwg.mxu0
    %v755 = vadd.f32 %v94, %v750
    %v756 = vadd.f32 %v95, %v753
    %v757 = vsel %vm104, %v755, 0.0
    %758 = vadd.xlane.f32.xlu0 %v757
    %v759 = vpop.xlane.xlu0 %758
    %v760 = vsel %vm104, %v756, 0.0
    %761 = vadd.xlane.f32.xlu0 %v760
    %v762 = vpop.xlane.xlu0 %761
    %v763 = vrcp.pop 32.0
    %v764 = vmul.f32 32.0, %v763
    %v765 = vsub.f32 1.0, %v764
    %v766 = vmul.f32 %v763, %v765
    %v767 = vadd.f32 %v763, %v766
    %vm768 = vweird.f32 %v763
    %v769 = vsel %vm768, %v763, %v767
    %v770 = vmul.f32 %v759, %v769
    %v771 = vmul.f32 %v762, %v769
    %v772 = vsub.f32 %v755, %v770
    %v773 = vsub.f32 %v756, %v771
    %v774 = vmul.f32 %v772, %v772
    %v775 = vmul.f32 %v773, %v773
    %v776 = vsel %vm104, %v774, 0.0
    %777 = vadd.xlane.f32.xlu0 %v776
    %v778 = vpop.xlane.xlu0 %777
    %v779 = vsel %vm104, %v775, 0.0
    %780 = vadd.xlane.f32.xlu0 %v779
    %v781 = vpop.xlane.xlu0 %780
    %v782 = vmul.f32 %v778, %v769
    %v783 = vmul.f32 %v781, %v769
    %v784 = vadd.f32 %v782, 1e-05
    %v785 = vadd.f32 %v783, 1e-05
    %v786 = vrsqrt.pop %v784
    %v787 = vmul.f32 %v786, %v784
    %v788 = vmul.f32 %v787, %v786
    %v789 = vmul.f32 0.5, %v788
    %v790 = vsub.f32 1.5, %v789
    %v791 = vmul.f32 %v786, %v790
    %vm792 = vweird.f32 %v784
    %vm793 = vweird.f32 %v786
    %vm794 = vmor %vm792, %vm793
    %v795 = vsel %vm794, %v786, %v791
    %v796 = vrsqrt.pop %v785
    %v797 = vmul.f32 %v796, %v785
    %v798 = vmul.f32 %v797, %v796
    %v799 = vmul.f32 0.5, %v798
    %v800 = vsub.f32 1.5, %v799
    %v801 = vmul.f32 %v796, %v800
    %vm802 = vweird.f32 %v785
    %vm803 = vweird.f32 %v796
    %vm804 = vmor %vm802, %vm803
    %v805 = vsel %vm804, %v796, %v801
    %v806 = vmul.f32 %v772, %v795
    %v807 = vmul.f32 %v773, %v805
    %v808 = vld [vmem:[%s6] sm:$0x1]
    %v810 = vperm.slane %v808, 0
    %v812 = vmul.f32 %v806, %v810
    %v813 = vmul.f32 %v807, %v810
    %v814 = vld [vmem:[%s7] sm:$0x1]
    %v816 = vperm.slane %v814, 0
    %v818 = vadd.f32 %v812, %v816
    %v819 = vadd.f32 %v813, %v816
    %820 = vst.msk [vmem:[#allocation11] sm:$0xff] %vm104, %v818
    %821 = vst.msk [vmem:[#allocation11 + $0x8] sm:$0xff] %vm104, %v819
    // Predicated region
    $region50: #{tpu_custom_call.1} parent=1 // pred_check
      _
    $region51: #{tpu_custom_call.1} parent=1 // pred_check_branch
      %823 = sbr.rel (0) target = $region53
    $region52: #{tpu_custom_call.1} parent=1 // pred_region
      %825 = vsyncadd [#allocation5], 0
      %s826 = sshll.u32 [#allocation11], 4
      %s827 = int_to_ptr.vmem [resolvable:$true] %s826
      %s828 = sshll.u32 %s8, 4
      %s829 = int_to_ptr.hbm [resolvable:$true] %s828
      %834 = dma.vmem_to_hbm [thread:$0]  %s827, 256, %s829, [#allocation5], 128, 128, 8
    $region53: #{tpu_custom_call.1} parent=1 // pred_fallthru
      _
    // Predicated region
    $region54: #{tpu_custom_call.1} parent=1 // pred_check
      _
    $region55: #{tpu_custom_call.1} parent=1 // pred_check_branch
      %836 = sbr.rel (0) target = $region57
    $region56: #{tpu_custom_call.1} parent=1 // pred_region
      %838 = vsyncadd [#allocation13], 0
      %s839 = sshll.u32 [#allocation12], 4
      %s840 = int_to_ptr.vmem [resolvable:$true] %s839
      %s841 = sshll.u32 %s9, 4
      %s842 = int_to_ptr.hbm [resolvable:$true] %s841
      %847 = dma.vmem_to_hbm [thread:$0]  %s840, 1024, %s842, [#allocation13], 128, 128, 8
    $region57: #{tpu_custom_call.1} parent=1 // pred_fallthru
      _
    // Predicated region
    $region58: #{tpu_custom_call.1} parent=1 // pred_check
      _
    $region59: #{tpu_custom_call.1} parent=1 // pred_check_branch
      %849 = sbr.rel (0) target = $region61
    $region60: #{tpu_custom_call.1} parent=1 // pred_region
      %851 = dma.done [#allocation5], 256
    $region61: #{tpu_custom_call.1} parent=1 // pred_fallthru
      _
    // Predicated region
    $region62: #{tpu_custom_call.1} parent=1 // pred_check
      _
    $region63: #{tpu_custom_call.1} parent=1 // pred_check_branch
      %853 = sbr.rel (0) target = $region65
    $region64: #{tpu_custom_call.1} parent=1 // pred_region
      %855 = dma.done [#allocation13], 1024
    $region65: #{tpu_custom_call.1} parent=1 // pred_fallthru
      _
    %856 = vsyncpa [#allocation4], 1
    %857 = vsyncpa [#allocation7], 1
    %858 = vsyncpa [#allocation10], 1
    %859 = vsyncpa [#allocation5], 1
    %860 = vsyncpa [#allocation13], 1

</llo_original>
